<compile_context>
chip_gen: v6e
topology: v6e:2x2x1
jax: 0.10.0
libtpu: 0.0.40
codegen_flags: <defaults>
</compile_context>

<pallas_src>
from functools import partial

import jax
import jax.numpy as jnp
from jax import lax
from jax.experimental import pallas as pl
from jax.experimental.pallas import tpu as pltpu


def _round_up(v, m):
    return (v + m - 1) // m * m


def _num_tensorcores():
    """Best-effort TensorCores per chip (megacore v4/v5p and v7x -> 2)."""
    try:
        kind = jax.devices()[0].device_kind.lower()
    except Exception:
        return 1
    if ("v4" in kind) or ("v5p" in kind) or ("v7" in kind):
        return 2
    return 1


def _pick_images_per_block(n, per_image_bytes, requested):
    """Images per grid step: whole batch in one step on single-TC chips,
    ceil(n/2) on two-TC chips, capped by a tile-padded, double-buffered VMEM
    footprint estimate."""
    if requested is None:
        budget = 8 * 1024 * 1024          # comfortably inside scoped VMEM on all gens
        vmem_cap = max(1, budget // max(1, per_image_bytes))
        target = -(-n // _num_tensorcores())   # ceil(n / #TensorCores)
        requested = min(target, vmem_cap)
    b = max(1, min(int(requested), n))
    # Keep blocks uniform.  NOTE: for awkward (e.g. prime) batch sizes this can
    # degrade toward 1 image/step -- a perf cliff, not a correctness issue.
    while n % b:
        b -= 1
    return b


# -----------------------------------------------------------------------------
# Fast path: stride == 1.  Depthwise taps as lane-offset views of a flattened
# (B, Cin, Hp*Wp) input; pointwise 1x1 as Cin broadcasted VPU FMAs.
# -----------------------------------------------------------------------------
def _dsconv_s1_kernel(x_ref, dw_w_ref, pw_w_ref, bias_ref, o_ref, *, wp, ksize):
    # x_ref:    (B, Cin, Lp)     zero-padded input, spatially flattened
    # dw_w_ref: (K*K, Cin, 1)    depthwise weights, tap-major
    # pw_w_ref: (Cin, Cout, 1)   pointwise (1x1) weights
    # bias_ref: (1, Cout, 1)     fused bias = pw_b + dw_b @ pw_w
    # o_ref:    (B, Cout, Lo)    Lo = Ho*Wp; columns >= Wo cropped by the caller
    bsz, cin, _ = x_ref.shape
    _, cout, lo = o_ref.shape

    # bf16 tap multiplies on bf16 inputs (packed VALU on v6e/v7x); f32
    # otherwise (also correct on v5e, which lacks bf16 VALU).
    tap_dtype = jnp.bfloat16 if x_ref.dtype == jnp.bfloat16 else jnp.float32

    x = x_ref[...].astype(tap_dtype)             # single base load
    dw_w = dw_w_ref[...].astype(tap_dtype)       # (K*K, Cin, 1), hoisted

    acc = None
    for kh in range(ksize):
        for kw in range(ksize):
            off = kh * wp + kw                   # static lane offset on flat axis
            win = x[:, :, off:off + lo]          # lane-offset view of base load
            tap = (win * dw_w[kh * ksize + kw]).astype(jnp.float32)
            acc = tap if acc is None else acc + tap      # (B, Cin, Lo) f32

    # 1x1 pointwise: Cin broadcasted VPU FMAs with pre-shaped weights/bias
    # (no per-iteration reshape/broadcast rebuilds inside the loop).
    pw_w = pw_w_ref[...].astype(jnp.float32)     # (Cin, Cout, 1)
    bias = bias_ref[...].astype(jnp.float32)     # (1, Cout, 1)
    out = acc[:, 0][:, None, :] * pw_w[0] + bias
    for ci in range(1, cin):
        out = out + acc[:, ci][:, None, :] * pw_w[ci]
    o_ref[...] = out.astype(o_ref.dtype)


def _ds_conv2d_stride1(x, dw_w, fused_bias, pw_w, *, padding, images_per_block):
    ksize, _, cin = dw_w.shape
    cout = pw_w.shape[1]
    n, _, h, w = x.shape
    hp, wp = h + 2 * padding, w + 2 * padding
    ho, wo = hp - ksize + 1, wp - ksize + 1

    # Zero-pad spatially; one extra bottom row keeps every tap's lane-offset
    # read in-bounds when the accumulator covers Ho*Wp flat positions.  The
    # flatten to (N, Cin, Lp) is free for contiguous NCHW.
    extra_rows = 1 if ksize > 1 else 0
    xp = jnp.pad(x, ((0, 0), (0, 0),
                     (padding, padding + extra_rows), (padding, padding)))
    lp = (hp + extra_rows) * wp
    xf = xp.reshape(n, cin, lp)
    lo = ho * wp                                  # lane-dense output length

    # Host-side operand shaping (done once; kernel loops stay pure FMAs).
    dw_w_k = dw_w.reshape(ksize * ksize, cin, 1)
    pw_w_k = pw_w.reshape(cin, cout, 1)
    bias_k = fused_bias.reshape(1, cout, 1)

    itemsize = x.dtype.itemsize
    per_image = 2 * (_round_up(cin, 8) * _round_up(lp, 128)
                     + _round_up(cout, 8) * _round_up(lo, 128)) * itemsize
    b = _pick_images_per_block(n, per_image, images_per_block)

    out_flat = pl.pallas_call(
        partial(_dsconv_s1_kernel, wp=wp, ksize=ksize),
        out_shape=jax.ShapeDtypeStruct((n, cout, lo), x.dtype),
        grid=(n // b,),
        in_specs=[
            pl.BlockSpec((b, cin, lp), lambda i: (i, 0, 0)),
            pl.BlockSpec((ksize * ksize, cin, 1), lambda i: (0, 0, 0)),
            pl.BlockSpec((cin, cout, 1), lambda i: (0, 0, 0)),
            pl.BlockSpec((1, cout, 1), lambda i: (0, 0, 0)),
        ],
        out_specs=pl.BlockSpec((b, cout, lo), lambda i: (i, 0, 0)),
        # TODO(synk): if profiling shows one idle v7x TensorCore, move the
        # batch axis to pltpu.CORE_PARALLEL (or pl.core_map).
        compiler_params=pltpu.CompilerParams(
            dimension_semantics=("parallel",),
            vmem_limit_bytes=32 * 1024 * 1024),
    )(xf, dw_w_k, pw_w_k, bias_k)

    # Free reshape (already channel-first), then one cheap column crop Wp->Wo.
    return out_flat.reshape(n, cout, ho, wp)[:, :, :, :wo]


# -----------------------------------------------------------------------------
# General fallback (stride > 1): windowed NCHW taps.  Correct but lane-sparse.
# TODO(synk): pre-decimate lanes per kw-parity instead of strided lax.slice
# gathers for stride 2, as suggested by the perf review.
# -----------------------------------------------------------------------------
def _dsconv_general_kernel(x_ref, dw_w_ref, pw_w_ref, bias_ref, o_ref, *,
                           ho, wo, stride, ksize):
    bsz, cin, _, _ = x_ref.shape
    _, cout, _ = o_ref.shape

    x = x_ref[...].astype(jnp.float32)
    dw_w = dw_w_ref[...].astype(jnp.float32)      # (K*K, Cin, 1, 1)

    acc = None
    for kh in range(ksize):
        for kw in range(ksize):
            win = lax.slice(
                x, (0, 0, kh, kw),
                (bsz, cin, kh + (ho - 1) * stride + 1,
                 kw + (wo - 1) * stride + 1),
                (1, 1, stride, stride))
            tap = win * dw_w[kh * ksize + kw]
            acc = tap if acc is None else acc + tap

    acc = acc.reshape(bsz, cin, ho * wo)

    pw_w = pw_w_ref[...].astype(jnp.float32)      # (Cin, Cout, 1)
    bias = bias_ref[...].astype(jnp.float32)      # (1, Cout, 1)
    out = acc[:, 0][:, None, :] * pw_w[0] + bias
    for ci in range(1, cin):
        out = out + acc[:, ci][:, None, :] * pw_w[ci]
    o_ref[...] = out.astype(o_ref.dtype)


def _ds_conv2d_general(x, dw_w, fused_bias, pw_w, *, stride, padding,
                       images_per_block):
    ksize, _, cin = dw_w.shape
    cout = pw_w.shape[1]
    n, _, h, w = x.shape
    xp = jnp.pad(x, ((0, 0), (0, 0), (padding, padding), (padding, padding)))
    hp, wp = h + 2 * padding, w + 2 * padding
    ho = (hp - ksize) // stride + 1
    wo = (wp - ksize) // stride + 1

    dw_w_k = dw_w.reshape(ksize * ksize, cin, 1, 1)
    pw_w_k = pw_w.reshape(cin, cout, 1)
    bias_k = fused_bias.reshape(1, cout, 1)

    itemsize = x.dtype.itemsize
    per_image = 2 * (cin * _round_up(hp, 8) * _round_up(wp, 128)
                     + _round_up(cout, 8) * _round_up(ho * wo, 128)) * itemsize
    b = _pick_images_per_block(n, per_image, images_per_block)

    out_flat = pl.pallas_call(
        partial(_dsconv_general_kernel, ho=ho, wo=wo, stride=stride,
                ksize=ksize),
        out_shape=jax.ShapeDtypeStruct((n, cout, ho * wo), x.dtype),
        grid=(n // b,),
        in_specs=[
            pl.BlockSpec((b, cin, hp, wp), lambda i: (i, 0, 0, 0)),
            pl.BlockSpec((ksize * ksize, cin, 1, 1), lambda i: (0, 0, 0, 0)),
            pl.BlockSpec((cin, cout, 1), lambda i: (0, 0, 0)),
            pl.BlockSpec((1, cout, 1), lambda i: (0, 0, 0)),
        ],
        out_specs=pl.BlockSpec((b, cout, ho * wo), lambda i: (i, 0, 0)),
        compiler_params=pltpu.CompilerParams(
            dimension_semantics=("parallel",),
            vmem_limit_bytes=32 * 1024 * 1024),
    )(xp, dw_w_k, pw_w_k, bias_k)

    return out_flat.reshape(n, cout, ho, wo)


def ds_conv2d(x_nchw, dw_w, dw_b, pw_w, pw_b, *, stride=1, padding=1,
              images_per_block=None):
    """DsConv2d forward.  x_nchw: (N, Cin, H, W) -> (N, Cout, Ho, Wo)."""
    ksize = dw_w.shape[0]
    n, _, h, w = x_nchw.shape
    ho = (h + 2 * padding - ksize) // stride + 1
    wo = (w + 2 * padding - ksize) // stride + 1
    assert ho >= 1 and wo >= 1, "empty output"

    # Fold the depthwise bias through the (linear) 1x1 conv:
    #   pw(dw(x) + dw_b) + pw_b == pw(dw(x)) + (dw_b @ pw_w + pw_b)
    fused_bias = (pw_b + dw_b @ pw_w).astype(jnp.float32)

    if stride == 1:
        return _ds_conv2d_stride1(x_nchw, dw_w, fused_bias, pw_w,
                                  padding=padding,
                                  images_per_block=images_per_block)
    return _ds_conv2d_general(x_nchw, dw_w, fused_bias, pw_w, stride=stride,
                              padding=padding,
                              images_per_block=images_per_block)


def _reference(x_nchw, dw_w, dw_b, pw_w, pw_b, *, stride=1, padding=1):
    """Pure-JAX reference (lax conv) for correctness checking."""
    cin = dw_w.shape[2]
    cout = pw_w.shape[1]
    x = jnp.transpose(x_nchw, (0, 2, 3, 1))             # NHWC
    dn = lax.conv_dimension_numbers(
        x.shape, (dw_w.shape[0], dw_w.shape[1], 1, cin),
        ('NHWC', 'HWIO', 'NHWC'))
    dw_hwio = dw_w.reshape(dw_w.shape[0], dw_w.shape[1], 1, cin)
    y = lax.conv_general_dilated(x, dw_hwio, (stride, stride),
                                 [(padding, padding), (padding, padding)],
                                 dimension_numbers=dn,
                                 feature_group_count=cin)
    y = y + dw_b.reshape(1, 1, 1, cin)
    pw_hwio = pw_w.reshape(1, 1, cin, cout)
    dn2 = lax.conv_dimension_numbers(y.shape, pw_hwio.shape,
                                     ('NHWC', 'HWIO', 'NHWC'))
    z = lax.conv_general_dilated(y, pw_hwio, (1, 1), [(0, 0), (0, 0)],
                                 dimension_numbers=dn2)
    z = z + pw_b.reshape(1, 1, 1, cout)
    return jnp.transpose(z, (0, 3, 1, 2))                # back to NCHW


if __name__ == "__main__":
    # Module config (consistent with DsConv2d usage in the Mix-FFN):
    #   dim_in=4, dim_out=8, kernel_size=3, padding=1, stride=1, bias=True
    N, C_IN, H, W = 2, 4, 16, 16
    C_OUT, K, PAD, STRIDE = 8, 3, 1, 1

    key = jax.random.PRNGKey(0)
    kx, k1, k2, k3, k4 = jax.random.split(key, 5)

    x = jax.random.normal(kx, (N, C_IN, H, W), jnp.float32)

    # Depthwise conv weight (PyTorch shape (C_IN, 1, K, K)) stored here as
    # (K, K, C_IN); pointwise 1x1 weight (PyTorch (C_OUT, C_IN, 1, 1)) stored
    # as (C_IN, C_OUT).  Semantics are identical.
    dw_w = 0.1 * jax.random.normal(k1, (K, K, C_IN), jnp.float32)
    dw_b = 0.1 * jax.random.normal(k2, (C_IN,), jnp.float32)
    pw_w = 0.1 * jax.random.normal(k3, (C_IN, C_OUT), jnp.float32)
    pw_b = 0.1 * jax.random.normal(k4, (C_OUT,), jnp.float32)

    out = ds_conv2d(x, dw_w, dw_b, pw_w, pw_b, stride=STRIDE, padding=PAD)
    out = jax.block_until_ready(out)

    ref = _reference(x, dw_w, dw_b, pw_w, pw_b, stride=STRIDE, padding=PAD)
    assert out.shape == (N, C_OUT, H, W), out.shape
    assert jnp.allclose(out, ref, atol=1e-5, rtol=1e-5), \
        float(jnp.max(jnp.abs(out - ref)))

    print("KERNEL_OK")
</pallas_src>

<mosaic_0001>
module attributes {stable_mosaic.version = 11 : i64} {
  func.func @_dsconv_s1_kernel(%arg0: i32, %arg1: memref<2x4x342xf32, #tpu.memory_space<vmem>>, %arg2: memref<9x4x1xf32, #tpu.memory_space<vmem>>, %arg3: memref<4x8x1xf32, #tpu.memory_space<vmem>>, %arg4: memref<1x8x1xf32, #tpu.memory_space<vmem>>, %arg5: memref<2x8x288xf32, #tpu.memory_space<vmem>>) attributes {dimension_semantics = [#tpu.dimension_semantics<parallel>], iteration_bounds = array<i64: 1>, scalar_prefetch = 0 : i64, scratch_operands = 0 : i64, tpu.core_type = #tpu.core_type<tc>, window_params = [{transform_indices = @transform_0, window_bounds = array<i64: 2, 4, 342>}, {pipeline_mode = #tpu.pipeline_mode<synchronous>, transform_indices = @transform_1, window_bounds = array<i64: 9, 4, 1>}, {pipeline_mode = #tpu.pipeline_mode<synchronous>, transform_indices = @transform_2, window_bounds = array<i64: 4, 8, 1>}, {pipeline_mode = #tpu.pipeline_mode<synchronous>, transform_indices = @transform_3, window_bounds = array<i64: 1, 8, 1>}, {transform_indices = @transform_4, window_bounds = array<i64: 2, 8, 288>}]} {
    %c0 = arith.constant 0 : index
    %c0_0 = arith.constant 0 : index
    %c0_1 = arith.constant 0 : index
    %0 = vector.load %arg1[%c0, %c0_0, %c0_1] : memref<2x4x342xf32, #tpu.memory_space<vmem>>, vector<2x4x342xf32>
    %c0_2 = arith.constant 0 : index
    %c0_3 = arith.constant 0 : index
    %c0_4 = arith.constant 0 : index
    %1 = vector.load %arg2[%c0_2, %c0_3, %c0_4] : memref<9x4x1xf32, #tpu.memory_space<vmem>>, vector<9x4x1xf32>
    %2 = vector.extract_strided_slice %0 {offsets = [0, 0, 0], sizes = [2, 4, 288], strides = [1, 1, 1]} : vector<2x4x342xf32> to vector<2x4x288xf32>
    %3 = vector.extract_strided_slice %1 {offsets = [0, 0, 0], sizes = [1, 4, 1], strides = [1, 1, 1]} : vector<9x4x1xf32> to vector<1x4x1xf32>
    %4 = vector.shape_cast %3 : vector<1x4x1xf32> to vector<4x1xf32>
    %5 = vector.shape_cast %4 : vector<4x1xf32> to vector<1x4x1xf32>
    %6 = vector.broadcast %5 : vector<1x4x1xf32> to vector<2x4x288xf32>
    %7 = arith.mulf %2, %6 : vector<2x4x288xf32>
    %8 = vector.extract_strided_slice %0 {offsets = [0, 0, 1], sizes = [2, 4, 288], strides = [1, 1, 1]} : vector<2x4x342xf32> to vector<2x4x288xf32>
    %9 = vector.extract_strided_slice %1 {offsets = [1, 0, 0], sizes = [1, 4, 1], strides = [1, 1, 1]} : vector<9x4x1xf32> to vector<1x4x1xf32>
    %10 = vector.shape_cast %9 : vector<1x4x1xf32> to vector<4x1xf32>
    %11 = vector.shape_cast %10 : vector<4x1xf32> to vector<1x4x1xf32>
    %12 = vector.broadcast %11 : vector<1x4x1xf32> to vector<2x4x288xf32>
    %13 = arith.mulf %8, %12 : vector<2x4x288xf32>
    %14 = arith.addf %7, %13 : vector<2x4x288xf32>
    %15 = vector.extract_strided_slice %0 {offsets = [0, 0, 2], sizes = [2, 4, 288], strides = [1, 1, 1]} : vector<2x4x342xf32> to vector<2x4x288xf32>
    %16 = vector.extract_strided_slice %1 {offsets = [2, 0, 0], sizes = [1, 4, 1], strides = [1, 1, 1]} : vector<9x4x1xf32> to vector<1x4x1xf32>
    %17 = vector.shape_cast %16 : vector<1x4x1xf32> to vector<4x1xf32>
    %18 = vector.shape_cast %17 : vector<4x1xf32> to vector<1x4x1xf32>
    %19 = vector.broadcast %18 : vector<1x4x1xf32> to vector<2x4x288xf32>
    %20 = arith.mulf %15, %19 : vector<2x4x288xf32>
    %21 = arith.addf %14, %20 : vector<2x4x288xf32>
    %22 = vector.extract_strided_slice %0 {offsets = [0, 0, 18], sizes = [2, 4, 288], strides = [1, 1, 1]} : vector<2x4x342xf32> to vector<2x4x288xf32>
    %23 = vector.extract_strided_slice %1 {offsets = [3, 0, 0], sizes = [1, 4, 1], strides = [1, 1, 1]} : vector<9x4x1xf32> to vector<1x4x1xf32>
    %24 = vector.shape_cast %23 : vector<1x4x1xf32> to vector<4x1xf32>
    %25 = vector.shape_cast %24 : vector<4x1xf32> to vector<1x4x1xf32>
    %26 = vector.broadcast %25 : vector<1x4x1xf32> to vector<2x4x288xf32>
    %27 = arith.mulf %22, %26 : vector<2x4x288xf32>
    %28 = arith.addf %21, %27 : vector<2x4x288xf32>
    %29 = vector.extract_strided_slice %0 {offsets = [0, 0, 19], sizes = [2, 4, 288], strides = [1, 1, 1]} : vector<2x4x342xf32> to vector<2x4x288xf32>
    %30 = vector.extract_strided_slice %1 {offsets = [4, 0, 0], sizes = [1, 4, 1], strides = [1, 1, 1]} : vector<9x4x1xf32> to vector<1x4x1xf32>
    %31 = vector.shape_cast %30 : vector<1x4x1xf32> to vector<4x1xf32>
    %32 = vector.shape_cast %31 : vector<4x1xf32> to vector<1x4x1xf32>
    %33 = vector.broadcast %32 : vector<1x4x1xf32> to vector<2x4x288xf32>
    %34 = arith.mulf %29, %33 : vector<2x4x288xf32>
    %35 = arith.addf %28, %34 : vector<2x4x288xf32>
    %36 = vector.extract_strided_slice %0 {offsets = [0, 0, 20], sizes = [2, 4, 288], strides = [1, 1, 1]} : vector<2x4x342xf32> to vector<2x4x288xf32>
    %37 = vector.extract_strided_slice %1 {offsets = [5, 0, 0], sizes = [1, 4, 1], strides = [1, 1, 1]} : vector<9x4x1xf32> to vector<1x4x1xf32>
    %38 = vector.shape_cast %37 : vector<1x4x1xf32> to vector<4x1xf32>
    %39 = vector.shape_cast %38 : vector<4x1xf32> to vector<1x4x1xf32>
    %40 = vector.broadcast %39 : vector<1x4x1xf32> to vector<2x4x288xf32>
    %41 = arith.mulf %36, %40 : vector<2x4x288xf32>
    %42 = arith.addf %35, %41 : vector<2x4x288xf32>
    %43 = vector.extract_strided_slice %0 {offsets = [0, 0, 36], sizes = [2, 4, 288], strides = [1, 1, 1]} : vector<2x4x342xf32> to vector<2x4x288xf32>
    %44 = vector.extract_strided_slice %1 {offsets = [6, 0, 0], sizes = [1, 4, 1], strides = [1, 1, 1]} : vector<9x4x1xf32> to vector<1x4x1xf32>
    %45 = vector.shape_cast %44 : vector<1x4x1xf32> to vector<4x1xf32>
    %46 = vector.shape_cast %45 : vector<4x1xf32> to vector<1x4x1xf32>
    %47 = vector.broadcast %46 : vector<1x4x1xf32> to vector<2x4x288xf32>
    %48 = arith.mulf %43, %47 : vector<2x4x288xf32>
    %49 = arith.addf %42, %48 : vector<2x4x288xf32>
    %50 = vector.extract_strided_slice %0 {offsets = [0, 0, 37], sizes = [2, 4, 288], strides = [1, 1, 1]} : vector<2x4x342xf32> to vector<2x4x288xf32>
    %51 = vector.extract_strided_slice %1 {offsets = [7, 0, 0], sizes = [1, 4, 1], strides = [1, 1, 1]} : vector<9x4x1xf32> to vector<1x4x1xf32>
    %52 = vector.shape_cast %51 : vector<1x4x1xf32> to vector<4x1xf32>
    %53 = vector.shape_cast %52 : vector<4x1xf32> to vector<1x4x1xf32>
    %54 = vector.broadcast %53 : vector<1x4x1xf32> to vector<2x4x288xf32>
    %55 = arith.mulf %50, %54 : vector<2x4x288xf32>
    %56 = arith.addf %49, %55 : vector<2x4x288xf32>
    %57 = vector.extract_strided_slice %0 {offsets = [0, 0, 38], sizes = [2, 4, 288], strides = [1, 1, 1]} : vector<2x4x342xf32> to vector<2x4x288xf32>
    %58 = vector.extract_strided_slice %1 {offsets = [8, 0, 0], sizes = [1, 4, 1], strides = [1, 1, 1]} : vector<9x4x1xf32> to vector<1x4x1xf32>
    %59 = vector.shape_cast %58 : vector<1x4x1xf32> to vector<4x1xf32>
    %60 = vector.shape_cast %59 : vector<4x1xf32> to vector<1x4x1xf32>
    %61 = vector.broadcast %60 : vector<1x4x1xf32> to vector<2x4x288xf32>
    %62 = arith.mulf %57, %61 : vector<2x4x288xf32>
    %63 = arith.addf %56, %62 : vector<2x4x288xf32>
    %c0_5 = arith.constant 0 : index
    %c0_6 = arith.constant 0 : index
    %c0_7 = arith.constant 0 : index
    %64 = vector.load %arg3[%c0_5, %c0_6, %c0_7] : memref<4x8x1xf32, #tpu.memory_space<vmem>>, vector<4x8x1xf32>
    %c0_8 = arith.constant 0 : index
    %c0_9 = arith.constant 0 : index
    %c0_10 = arith.constant 0 : index
    %65 = vector.load %arg4[%c0_8, %c0_9, %c0_10] : memref<1x8x1xf32, #tpu.memory_space<vmem>>, vector<1x8x1xf32>
    %66 = vector.extract_strided_slice %63 {offsets = [0, 0, 0], sizes = [2, 1, 288], strides = [1, 1, 1]} : vector<2x4x288xf32> to vector<2x1x288xf32>
    %67 = vector.shape_cast %66 : vector<2x1x288xf32> to vector<2x288xf32>
    %68 = vector.shape_cast %67 : vector<2x288xf32> to vector<2x1x288xf32>
    %69 = vector.extract_strided_slice %64 {offsets = [0, 0, 0], sizes = [1, 8, 1], strides = [1, 1, 1]} : vector<4x8x1xf32> to vector<1x8x1xf32>
    %70 = vector.shape_cast %69 : vector<1x8x1xf32> to vector<8x1xf32>
    %71 = vector.shape_cast %70 : vector<8x1xf32> to vector<1x8x1xf32>
    %72 = vector.broadcast %68 : vector<2x1x288xf32> to vector<2x8x288xf32>
    %73 = vector.broadcast %71 : vector<1x8x1xf32> to vector<2x8x288xf32>
    %74 = arith.mulf %72, %73 : vector<2x8x288xf32>
    %75 = vector.broadcast %65 : vector<1x8x1xf32> to vector<2x8x288xf32>
    %76 = arith.addf %74, %75 : vector<2x8x288xf32>
    %77 = vector.extract_strided_slice %63 {offsets = [0, 1, 0], sizes = [2, 1, 288], strides = [1, 1, 1]} : vector<2x4x288xf32> to vector<2x1x288xf32>
    %78 = vector.shape_cast %77 : vector<2x1x288xf32> to vector<2x288xf32>
    %79 = vector.shape_cast %78 : vector<2x288xf32> to vector<2x1x288xf32>
    %80 = vector.extract_strided_slice %64 {offsets = [1, 0, 0], sizes = [1, 8, 1], strides = [1, 1, 1]} : vector<4x8x1xf32> to vector<1x8x1xf32>
    %81 = vector.shape_cast %80 : vector<1x8x1xf32> to vector<8x1xf32>
    %82 = vector.shape_cast %81 : vector<8x1xf32> to vector<1x8x1xf32>
    %83 = vector.broadcast %79 : vector<2x1x288xf32> to vector<2x8x288xf32>
    %84 = vector.broadcast %82 : vector<1x8x1xf32> to vector<2x8x288xf32>
    %85 = arith.mulf %83, %84 : vector<2x8x288xf32>
    %86 = arith.addf %76, %85 : vector<2x8x288xf32>
    %87 = vector.extract_strided_slice %63 {offsets = [0, 2, 0], sizes = [2, 1, 288], strides = [1, 1, 1]} : vector<2x4x288xf32> to vector<2x1x288xf32>
    %88 = vector.shape_cast %87 : vector<2x1x288xf32> to vector<2x288xf32>
    %89 = vector.shape_cast %88 : vector<2x288xf32> to vector<2x1x288xf32>
    %90 = vector.extract_strided_slice %64 {offsets = [2, 0, 0], sizes = [1, 8, 1], strides = [1, 1, 1]} : vector<4x8x1xf32> to vector<1x8x1xf32>
    %91 = vector.shape_cast %90 : vector<1x8x1xf32> to vector<8x1xf32>
    %92 = vector.shape_cast %91 : vector<8x1xf32> to vector<1x8x1xf32>
    %93 = vector.broadcast %89 : vector<2x1x288xf32> to vector<2x8x288xf32>
    %94 = vector.broadcast %92 : vector<1x8x1xf32> to vector<2x8x288xf32>
    %95 = arith.mulf %93, %94 : vector<2x8x288xf32>
    %96 = arith.addf %86, %95 : vector<2x8x288xf32>
    %97 = vector.extract_strided_slice %63 {offsets = [0, 3, 0], sizes = [2, 1, 288], strides = [1, 1, 1]} : vector<2x4x288xf32> to vector<2x1x288xf32>
    %98 = vector.shape_cast %97 : vector<2x1x288xf32> to vector<2x288xf32>
    %99 = vector.shape_cast %98 : vector<2x288xf32> to vector<2x1x288xf32>
    %100 = vector.extract_strided_slice %64 {offsets = [3, 0, 0], sizes = [1, 8, 1], strides = [1, 1, 1]} : vector<4x8x1xf32> to vector<1x8x1xf32>
    %101 = vector.shape_cast %100 : vector<1x8x1xf32> to vector<8x1xf32>
    %102 = vector.shape_cast %101 : vector<8x1xf32> to vector<1x8x1xf32>
    %103 = vector.broadcast %99 : vector<2x1x288xf32> to vector<2x8x288xf32>
    %104 = vector.broadcast %102 : vector<1x8x1xf32> to vector<2x8x288xf32>
    %105 = arith.mulf %103, %104 : vector<2x8x288xf32>
    %106 = arith.addf %96, %105 : vector<2x8x288xf32>
    %c0_11 = arith.constant 0 : index
    %c0_12 = arith.constant 0 : index
    %c0_13 = arith.constant 0 : index
    %107 = vector.load %arg5[%c0_11, %c0_12, %c0_13] : memref<2x8x288xf32, #tpu.memory_space<vmem>>, vector<2x8x288xf32>
    tpu.vector_store %arg5[%c0_11, %c0_12, %c0_13], %106 {strides = array<i32>} : memref<2x8x288xf32, #tpu.memory_space<vmem>>, vector<2x8x288xf32>,
    return
  }
  func.func @transform_0(%arg0: i32) -> (i32, i32, i32) {
    %c0_i32 = arith.constant 0 : i32
    %c0_i32_0 = arith.constant 0 : i32
    %c0_i32_1 = arith.constant 0 : i32
    return %arg0, %c0_i32, %c0_i32_0 : i32, i32, i32
  }
  func.func @transform_1(%arg0: i32) -> (i32, i32, i32) {
    %c0_i32 = arith.constant 0 : i32
    %c0_i32_0 = arith.constant 0 : i32
    %c0_i32_1 = arith.constant 0 : i32
    %c0_i32_2 = arith.constant 0 : i32
    return %c0_i32, %c0_i32_0, %c0_i32_1 : i32, i32, i32
  }
  func.func @transform_2(%arg0: i32) -> (i32, i32, i32) {
    %c0_i32 = arith.constant 0 : i32
    %c0_i32_0 = arith.constant 0 : i32
    %c0_i32_1 = arith.constant 0 : i32
    %c0_i32_2 = arith.constant 0 : i32
    return %c0_i32, %c0_i32_0, %c0_i32_1 : i32, i32, i32
  }
  func.func @transform_3(%arg0: i32) -> (i32, i32, i32) {
    %c0_i32 = arith.constant 0 : i32
    %c0_i32_0 = arith.constant 0 : i32
    %c0_i32_1 = arith.constant 0 : i32
    %c0_i32_2 = arith.constant 0 : i32
    return %c0_i32, %c0_i32_0, %c0_i32_1 : i32, i32, i32
  }
  func.func @transform_4(%arg0: i32) -> (i32, i32, i32) {
    %c0_i32 = arith.constant 0 : i32
    %c0_i32_0 = arith.constant 0 : i32
    %c0_i32_1 = arith.constant 0 : i32
    return %arg0, %c0_i32, %c0_i32_0 : i32, i32, i32
  }
}

</mosaic_0001>

<llo_original>
// kernel: tpu_custom_call.1
$region0: #{tpu_custom_call.1}
  #allocation0 [shape = 'u32[]', space=smem, size = 0x4, offset = 0x4, fixed_abs, tag = 'smem constant byte address 0x4 - core index']
  #allocation1 [shape = 'u32[144,128]{1,0:T(1,128)}', space=vmem, size = 0x12000, scoped, tag = 'internal scratch']
  %s0 = inlined_call_operand.vmem [shape: f32[2,4,342], index: 0, kind: input, shape index: {}]
  %s1 = inlined_call_operand.vmem [shape: f32[9,4,1], index: 1, kind: input, shape index: {}]
  %s2 = inlined_call_operand.vmem [shape: f32[4,8,1], index: 2, kind: input, shape index: {}]
  %s3 = inlined_call_operand.vmem [shape: f32[1,8,1], index: 3, kind: input, shape index: {}]
  %s4 = inlined_call_operand.hbm [shape: f32[2,8,288], index: 4, kind: output, shape index: {}]
  %s5 = sld [smem:[#allocation0]]
  $region26: #{tpu_custom_call.1} parent=0
    _
  %s7 = ssub.s32 1, %s5
  %s8 = scalar_select 0, %s7, %s5
  $region1: #{tpu_custom_call.1} parent=0
    #allocation2 [shape = 'u8[24576]{0}', space=vmem, size = 0x6000, scoped, tag = 'output window, operand 0, single buffered']
    #allocation3 [shape = 's32[1]{0}', space=sflag, size = 0x4, scoped, tag = 'scoped memory for tpu_custom_call.1']
    %9 = vsyncpa [#allocation3], 0
    // Predicated region
    $region2: #{tpu_custom_call.1} parent=1 // pred_check
      _
    $region3: #{tpu_custom_call.1} parent=1 // pred_check_branch
      %11 = sbr.rel (0) target = $region5
    $region4: #{tpu_custom_call.1} parent=1 // pred_region
      _
    $region5: #{tpu_custom_call.1} parent=1 // pred_fallthru
      _
    // Predicated region
    $region6: #{tpu_custom_call.1} parent=1 // pred_check
      _
    $region7: #{tpu_custom_call.1} parent=1 // pred_check_branch
      %13 = sbr.rel (0) target = $region9
    $region8: #{tpu_custom_call.1} parent=1 // pred_region
      _
    $region9: #{tpu_custom_call.1} parent=1 // pred_fallthru
      _
    // Predicated region
    $region10: #{tpu_custom_call.1} parent=1 // pred_check
      _
    $region11: #{tpu_custom_call.1} parent=1 // pred_check_branch
      %15 = sbr.rel (0) target = $region13
    $region12: #{tpu_custom_call.1} parent=1 // pred_region
      _
    $region13: #{tpu_custom_call.1} parent=1 // pred_fallthru
      _
    // Predicated region
    $region14: #{tpu_custom_call.1} parent=1 // pred_check
      _
    $region15: #{tpu_custom_call.1} parent=1 // pred_check_branch
      %17 = sbr.rel (0) target = $region17
    $region16: #{tpu_custom_call.1} parent=1 // pred_region
      _
    $region17: #{tpu_custom_call.1} parent=1 // pred_fallthru
      _
    %v18 = vld [vmem:[%s0] sm:$0xff]
    %v19 = vld [vmem:[%s0 + $0x8] sm:$0xf]
    %v20 = vld [vmem:[%s0 + $0xc] sm:$0xff]
    %v21 = vld [vmem:[%s0 + $0x14] sm:$0xf]
    %v22 = vld [vmem:[%s1] sm:$0xf]
    %v23 = vld [vmem:[%s1 + $0x4] sm:$0xf]
    %v24 = vld [vmem:[%s1 + $0x8] sm:$0xf]
    %v25 = vld [vmem:[%s1 + $0xc] sm:$0xf]
    %v26 = vld [vmem:[%s1 + $0x10] sm:$0xf]
    %v27 = vld [vmem:[%s1 + $0x14] sm:$0xf]
    %v28 = vld [vmem:[%s1 + $0x18] sm:$0xf]
    %v29 = vld [vmem:[%s1 + $0x1c] sm:$0xf]
    %v30 = vld [vmem:[%s1 + $0x20] sm:$0xf]
    %32 = vset.pattern.permute.xlu0 0
    %33 = vperm.xlu0 %32, %v22
    %v34 = vpop.permute.xlu0 %33
    %v36 = vunpack.c.l.s4 839922192
    %v37 = vunpack.c.0.s8 %v36
    %v38 = vlaneseq
    %v39 = vshrl.u32 %v38, 7
    %v40 = vsub.s32 %v37, %v39
    %v41 = vrot.slane %v34, %v40
    %v43 = vmul.f32 %v18, %v41
    %v44 = vmul.f32 %v19, %v41
    %v45 = vmul.f32 %v20, %v41
    %v46 = vmul.f32 %v21, %v41
    %48 = vset.pattern.permute.xlu0 0
    %49 = vperm.xlu0 %48, %v23
    %v50 = vpop.permute.xlu0 %49
    %v52 = vunpack.c.l.s4 839922192
    %v53 = vunpack.c.0.s8 %v52
    %v54 = vlaneseq
    %v55 = vshrl.u32 %v54, 7
    %v56 = vsub.s32 %v53, %v55
    %v57 = vrot.slane %v50, %v56
    %v59 = vmul.f32 %v18, %v57
    %v60 = vmul.f32 %v19, %v57
    %v61 = vmul.f32 %v20, %v57
    %v62 = vmul.f32 %v21, %v57
    %67 = vrot.lane.b32.xlu0 %v59, 127
    %v68 = vpop.permute.xlu0 %67
    %69 = vrot.lane.b32.xlu0 %v60, 127
    %v70 = vpop.permute.xlu0 %69
    %71 = vrot.lane.b32.xlu0 %v61, 127
    %v72 = vpop.permute.xlu0 %71
    %73 = vrot.lane.b32.xlu0 %v62, 127
    %v74 = vpop.permute.xlu0 %73
    %v75 = vrot.slane %v68, 4
    %v76 = vrot.slane %v70, 4
    %v77 = vrot.slane %v72, 4
    %v78 = vrot.slane %v74, 4
    %vm79 = vcmask 1043456
    %v80 = vsel %vm79, %v75, %v76
    %vm81 = vcmask 1039360
    %v82 = vsel %vm81, %v68, %v80
    %v83 = vsel %vm79, %v77, %v78
    %v84 = vsel %vm81, %v72, %v83
    %v89 = vadd.f32 %v43, %v82
    %v90 = vadd.f32 %v44, %v70
    %v91 = vadd.f32 %v45, %v84
    %v92 = vadd.f32 %v46, %v74
    %94 = vset.pattern.permute.xlu0 0
    %95 = vperm.xlu0 %94, %v24
    %v96 = vpop.permute.xlu0 %95
    %v98 = vunpack.c.l.s4 839922192
    %v99 = vunpack.c.0.s8 %v98
    %v100 = vlaneseq
    %v101 = vshrl.u32 %v100, 7
    %v102 = vsub.s32 %v99, %v101
    %v103 = vrot.slane %v96, %v102
    %v105 = vmul.f32 %v18, %v103
    %v106 = vmul.f32 %v19, %v103
    %v107 = vmul.f32 %v20, %v103
    %v108 = vmul.f32 %v21, %v103
    %113 = vrot.lane.b32.xlu0 %v105, 126
    %v114 = vpop.permute.xlu0 %113
    %115 = vrot.lane.b32.xlu0 %v106, 126
    %v116 = vpop.permute.xlu0 %115
    %117 = vrot.lane.b32.xlu0 %v107, 126
    %v118 = vpop.permute.xlu0 %117
    %119 = vrot.lane.b32.xlu0 %v108, 126
    %v120 = vpop.permute.xlu0 %119
    %v121 = vrot.slane %v114, 4
    %v122 = vrot.slane %v116, 4
    %v123 = vrot.slane %v118, 4
    %v124 = vrot.slane %v120, 4
    %v125 = vsel %vm79, %v121, %v122
    %vm126 = vcmask 1031168
    %v127 = vsel %vm126, %v114, %v125
    %v128 = vsel %vm79, %v123, %v124
    %v129 = vsel %vm126, %v118, %v128
    %v134 = vadd.f32 %v89, %v127
    %v135 = vadd.f32 %v90, %v116
    %v136 = vadd.f32 %v91, %v129
    %v137 = vadd.f32 %v92, %v120
    %139 = vset.pattern.permute.xlu0 0
    %140 = vperm.xlu0 %139, %v25
    %v141 = vpop.permute.xlu0 %140
    %v143 = vunpack.c.l.s4 839922192
    %v144 = vunpack.c.0.s8 %v143
    %v145 = vlaneseq
    %v146 = vshrl.u32 %v145, 7
    %v147 = vsub.s32 %v144, %v146
    %v148 = vrot.slane %v141, %v147
    %v150 = vmul.f32 %v18, %v148
    %v151 = vmul.f32 %v19, %v148
    %v152 = vmul.f32 %v20, %v148
    %v153 = vmul.f32 %v21, %v148
    %158 = vrot.lane.b32.xlu0 %v150, 110
    %v159 = vpop.permute.xlu0 %158
    %160 = vrot.lane.b32.xlu0 %v151, 110
    %v161 = vpop.permute.xlu0 %160
    %162 = vrot.lane.b32.xlu0 %v152, 110
    %v163 = vpop.permute.xlu0 %162
    %164 = vrot.lane.b32.xlu0 %v153, 110
    %v165 = vpop.permute.xlu0 %164
    %v166 = vrot.slane %v159, 4
    %v167 = vrot.slane %v161, 4
    %v168 = vrot.slane %v163, 4
    %v169 = vrot.slane %v165, 4
    %v170 = vsel %vm79, %v166, %v167
    %vm171 = vcmask 900096
    %v172 = vsel %vm171, %v159, %v170
    %v173 = vsel %vm79, %v168, %v169
    %v174 = vsel %vm171, %v163, %v173
    %v179 = vadd.f32 %v134, %v172
    %v180 = vadd.f32 %v135, %v161
    %v181 = vadd.f32 %v136, %v174
    %v182 = vadd.f32 %v137, %v165
    %184 = vset.pattern.permute.xlu0 0
    %185 = vperm.xlu0 %184, %v26
    %v186 = vpop.permute.xlu0 %185
    %v188 = vunpack.c.l.s4 839922192
    %v189 = vunpack.c.0.s8 %v188
    %v190 = vlaneseq
    %v191 = vshrl.u32 %v190, 7
    %v192 = vsub.s32 %v189, %v191
    %v193 = vrot.slane %v186, %v192
    %v195 = vmul.f32 %v18, %v193
    %v196 = vmul.f32 %v19, %v193
    %v197 = vmul.f32 %v20, %v193
    %v198 = vmul.f32 %v21, %v193
    %203 = vrot.lane.b32.xlu0 %v195, 109
    %v204 = vpop.permute.xlu0 %203
    %205 = vrot.lane.b32.xlu0 %v196, 109
    %v206 = vpop.permute.xlu0 %205
    %207 = vrot.lane.b32.xlu0 %v197, 109
    %v208 = vpop.permute.xlu0 %207
    %209 = vrot.lane.b32.xlu0 %v198, 109
    %v210 = vpop.permute.xlu0 %209
    %v211 = vrot.slane %v204, 4
    %v212 = vrot.slane %v206, 4
    %v213 = vrot.slane %v208, 4
    %v214 = vrot.slane %v210, 4
    %v215 = vsel %vm79, %v211, %v212
    %vm216 = vcmask 891904
    %v217 = vsel %vm216, %v204, %v215
    %v218 = vsel %vm79, %v213, %v214
    %v219 = vsel %vm216, %v208, %v218
    %v224 = vadd.f32 %v179, %v217
    %v225 = vadd.f32 %v180, %v206
    %v226 = vadd.f32 %v181, %v219
    %v227 = vadd.f32 %v182, %v210
    %229 = vset.pattern.permute.xlu0 0
    %230 = vperm.xlu0 %229, %v27
    %v231 = vpop.permute.xlu0 %230
    %v233 = vunpack.c.l.s4 839922192
    %v234 = vunpack.c.0.s8 %v233
    %v235 = vlaneseq
    %v236 = vshrl.u32 %v235, 7
    %v237 = vsub.s32 %v234, %v236
    %v238 = vrot.slane %v231, %v237
    %v240 = vmul.f32 %v18, %v238
    %v241 = vmul.f32 %v19, %v238
    %v242 = vmul.f32 %v20, %v238
    %v243 = vmul.f32 %v21, %v238
    %248 = vrot.lane.b32.xlu0 %v240, 108
    %v249 = vpop.permute.xlu0 %248
    %250 = vrot.lane.b32.xlu0 %v241, 108
    %v251 = vpop.permute.xlu0 %250
    %252 = vrot.lane.b32.xlu0 %v242, 108
    %v253 = vpop.permute.xlu0 %252
    %254 = vrot.lane.b32.xlu0 %v243, 108
    %v255 = vpop.permute.xlu0 %254
    %v256 = vrot.slane %v249, 4
    %v257 = vrot.slane %v251, 4
    %v258 = vrot.slane %v253, 4
    %v259 = vrot.slane %v255, 4
    %v260 = vsel %vm79, %v256, %v257
    %vm261 = vcmask 883712
    %v262 = vsel %vm261, %v249, %v260
    %v263 = vsel %vm79, %v258, %v259
    %v264 = vsel %vm261, %v253, %v263
    %v269 = vadd.f32 %v224, %v262
    %v270 = vadd.f32 %v225, %v251
    %v271 = vadd.f32 %v226, %v264
    %v272 = vadd.f32 %v227, %v255
    %274 = vset.pattern.permute.xlu0 0
    %275 = vperm.xlu0 %274, %v28
    %v276 = vpop.permute.xlu0 %275
    %v278 = vunpack.c.l.s4 839922192
    %v279 = vunpack.c.0.s8 %v278
    %v280 = vlaneseq
    %v281 = vshrl.u32 %v280, 7
    %v282 = vsub.s32 %v279, %v281
    %v283 = vrot.slane %v276, %v282
    %v285 = vmul.f32 %v18, %v283
    %v286 = vmul.f32 %v19, %v283
    %v287 = vmul.f32 %v20, %v283
    %v288 = vmul.f32 %v21, %v283
    %293 = vrot.lane.b32.xlu0 %v285, 92
    %v294 = vpop.permute.xlu0 %293
    %295 = vrot.lane.b32.xlu0 %v286, 92
    %v296 = vpop.permute.xlu0 %295
    %297 = vrot.lane.b32.xlu0 %v287, 92
    %v298 = vpop.permute.xlu0 %297
    %299 = vrot.lane.b32.xlu0 %v288, 92
    %v300 = vpop.permute.xlu0 %299
    %v301 = vrot.slane %v294, 4
    %v302 = vrot.slane %v296, 4
    %v303 = vrot.slane %v298, 4
    %v304 = vrot.slane %v300, 4
    %v305 = vsel %vm79, %v301, %v302
    %vm306 = vcmask 752640
    %v307 = vsel %vm306, %v294, %v305
    %v308 = vsel %vm79, %v303, %v304
    %v309 = vsel %vm306, %v298, %v308
    %v314 = vadd.f32 %v269, %v307
    %v315 = vadd.f32 %v270, %v296
    %v316 = vadd.f32 %v271, %v309
    %v317 = vadd.f32 %v272, %v300
    %319 = vset.pattern.permute.xlu0 0
    %320 = vperm.xlu0 %319, %v29
    %v321 = vpop.permute.xlu0 %320
    %v323 = vunpack.c.l.s4 839922192
    %v324 = vunpack.c.0.s8 %v323
    %v325 = vlaneseq
    %v326 = vshrl.u32 %v325, 7
    %v327 = vsub.s32 %v324, %v326
    %v328 = vrot.slane %v321, %v327
    %v330 = vmul.f32 %v18, %v328
    %v331 = vmul.f32 %v19, %v328
    %v332 = vmul.f32 %v20, %v328
    %v333 = vmul.f32 %v21, %v328
    %338 = vrot.lane.b32.xlu0 %v330, 91
    %v339 = vpop.permute.xlu0 %338
    %340 = vrot.lane.b32.xlu0 %v331, 91
    %v341 = vpop.permute.xlu0 %340
    %342 = vrot.lane.b32.xlu0 %v332, 91
    %v343 = vpop.permute.xlu0 %342
    %344 = vrot.lane.b32.xlu0 %v333, 91
    %v345 = vpop.permute.xlu0 %344
    %v346 = vrot.slane %v339, 4
    %v347 = vrot.slane %v341, 4
    %v348 = vrot.slane %v343, 4
    %v349 = vrot.slane %v345, 4
    %v350 = vsel %vm79, %v346, %v347
    %vm351 = vcmask 744448
    %v352 = vsel %vm351, %v339, %v350
    %v353 = vsel %vm79, %v348, %v349
    %v354 = vsel %vm351, %v343, %v353
    %v359 = vadd.f32 %v314, %v352
    %v360 = vadd.f32 %v315, %v341
    %v361 = vadd.f32 %v316, %v354
    %v362 = vadd.f32 %v317, %v345
    %364 = vset.pattern.permute.xlu0 0
    %365 = vperm.xlu0 %364, %v30
    %v366 = vpop.permute.xlu0 %365
    %v368 = vunpack.c.l.s4 839922192
    %v369 = vunpack.c.0.s8 %v368
    %v370 = vlaneseq
    %v371 = vshrl.u32 %v370, 7
    %v372 = vsub.s32 %v369, %v371
    %v373 = vrot.slane %v366, %v372
    %v375 = vmul.f32 %v18, %v373
    %v376 = vmul.f32 %v19, %v373
    %v377 = vmul.f32 %v20, %v373
    %v378 = vmul.f32 %v21, %v373
    %383 = vrot.lane.b32.xlu0 %v375, 90
    %v384 = vpop.permute.xlu0 %383
    %385 = vrot.lane.b32.xlu0 %v376, 90
    %v386 = vpop.permute.xlu0 %385
    %387 = vrot.lane.b32.xlu0 %v377, 90
    %v388 = vpop.permute.xlu0 %387
    %389 = vrot.lane.b32.xlu0 %v378, 90
    %v390 = vpop.permute.xlu0 %389
    %v391 = vrot.slane %v384, 4
    %v392 = vrot.slane %v386, 4
    %v393 = vrot.slane %v388, 4
    %v394 = vrot.slane %v390, 4
    %v395 = vsel %vm79, %v391, %v392
    %vm396 = vcmask 736256
    %v397 = vsel %vm396, %v384, %v395
    %v398 = vsel %vm79, %v393, %v394
    %v399 = vsel %vm396, %v388, %v398
    %v404 = vadd.f32 %v359, %v397
    %v405 = vadd.f32 %v360, %v386
    %v406 = vadd.f32 %v361, %v399
    %v407 = vadd.f32 %v362, %v390
    %v408 = vld [vmem:[%s2] sm:$0xff]
    %v409 = vld [vmem:[%s2 + $0x8] sm:$0xff]
    %v410 = vld [vmem:[%s2 + $0x10] sm:$0xff]
    %v411 = vld [vmem:[%s2 + $0x18] sm:$0xff]
    %v412 = vld [vmem:[%s3] sm:$0xff]
    %v417 = vlaneseq
    %v418 = vshrl.u32 %v417, 7
    %v419 = vsub.s32 0, %v418
    %v420 = vrot.slane %v404, %v419
    %v421 = vlaneseq
    %v422 = vshrl.u32 %v421, 7
    %v423 = vsub.s32 4, %v422
    %v424 = vrot.slane %v404, %v423
    %v425 = vlaneseq
    %v426 = vshrl.u32 %v425, 7
    %v427 = vsub.s32 0, %v426
    %v428 = vrot.slane %v405, %v427
    %v429 = vlaneseq
    %v430 = vshrl.u32 %v429, 7
    %v431 = vsub.s32 0, %v430
    %v432 = vrot.slane %v406, %v431
    %v433 = vlaneseq
    %v434 = vshrl.u32 %v433, 7
    %v435 = vsub.s32 4, %v434
    %v436 = vrot.slane %v406, %v435
    %v437 = vlaneseq
    %v438 = vshrl.u32 %v437, 7
    %v439 = vsub.s32 0, %v438
    %v440 = vrot.slane %v407, %v439
    %v447 = vlaneseq
    %v448 = vshrl.u32 %v447, 7
    %v449 = vsub.s32 0, %v448
    %v450 = vrot.slane %v420, %v449
    %v451 = vlaneseq
    %v452 = vshrl.u32 %v451, 7
    %v453 = vsub.s32 0, %v452
    %v454 = vrot.slane %v424, %v453
    %v455 = vlaneseq
    %v456 = vshrl.u32 %v455, 7
    %v457 = vsub.s32 0, %v456
    %v458 = vrot.slane %v428, %v457
    %v459 = vlaneseq
    %v460 = vshrl.u32 %v459, 7
    %v461 = vsub.s32 0, %v460
    %v462 = vrot.slane %v432, %v461
    %v463 = vlaneseq
    %v464 = vshrl.u32 %v463, 7
    %v465 = vsub.s32 0, %v464
    %v466 = vrot.slane %v436, %v465
    %v467 = vlaneseq
    %v468 = vshrl.u32 %v467, 7
    %v469 = vsub.s32 0, %v468
    %v470 = vrot.slane %v440, %v469
    %472 = vset.pattern.permute.xlu0 0
    %473 = vperm.xlu0 %472, %v408
    %v474 = vpop.permute.xlu0 %473
    %v476 = vmul.f32 %v450, %v474
    %v477 = vmul.f32 %v454, %v474
    %v478 = vmul.f32 %v458, %v474
    %v479 = vmul.f32 %v462, %v474
    %v480 = vmul.f32 %v466, %v474
    %v481 = vmul.f32 %v470, %v474
    %483 = vset.pattern.permute.xlu0 0
    %484 = vperm.xlu0 %483, %v412
    %v485 = vpop.permute.xlu0 %484
    %v487 = vadd.f32 %v476, %v485
    %v488 = vadd.f32 %v477, %v485
    %v489 = vadd.f32 %v478, %v485
    %v490 = vadd.f32 %v479, %v485
    %v491 = vadd.f32 %v480, %v485
    %v492 = vadd.f32 %v481, %v485
    %v493 = vlaneseq
    %v494 = vshrl.u32 %v493, 7
    %v495 = vsub.s32 1, %v494
    %v496 = vrot.slane %v404, %v495
    %v497 = vlaneseq
    %v498 = vshrl.u32 %v497, 7
    %v499 = vsub.s32 5, %v498
    %v500 = vrot.slane %v404, %v499
    %v501 = vlaneseq
    %v502 = vshrl.u32 %v501, 7
    %v503 = vsub.s32 1, %v502
    %v504 = vrot.slane %v405, %v503
    %v505 = vlaneseq
    %v506 = vshrl.u32 %v505, 7
    %v507 = vsub.s32 1, %v506
    %v508 = vrot.slane %v406, %v507
    %v509 = vlaneseq
    %v510 = vshrl.u32 %v509, 7
    %v511 = vsub.s32 5, %v510
    %v512 = vrot.slane %v406, %v511
    %v513 = vlaneseq
    %v514 = vshrl.u32 %v513, 7
    %v515 = vsub.s32 1, %v514
    %v516 = vrot.slane %v407, %v515
    %v523 = vlaneseq
    %v524 = vshrl.u32 %v523, 7
    %v525 = vsub.s32 1, %v524
    %v526 = vrot.slane %v496, %v525
    %v527 = vlaneseq
    %v528 = vshrl.u32 %v527, 7
    %v529 = vsub.s32 1, %v528
    %v530 = vrot.slane %v500, %v529
    %v531 = vlaneseq
    %v532 = vshrl.u32 %v531, 7
    %v533 = vsub.s32 1, %v532
    %v534 = vrot.slane %v504, %v533
    %v535 = vlaneseq
    %v536 = vshrl.u32 %v535, 7
    %v537 = vsub.s32 1, %v536
    %v538 = vrot.slane %v508, %v537
    %v539 = vlaneseq
    %v540 = vshrl.u32 %v539, 7
    %v541 = vsub.s32 1, %v540
    %v542 = vrot.slane %v512, %v541
    %v543 = vlaneseq
    %v544 = vshrl.u32 %v543, 7
    %v545 = vsub.s32 1, %v544
    %v546 = vrot.slane %v516, %v545
    %548 = vset.pattern.permute.xlu0 0
    %549 = vperm.xlu0 %548, %v409
    %v550 = vpop.permute.xlu0 %549
    %v552 = vmul.f32 %v526, %v550
    %v553 = vmul.f32 %v530, %v550
    %v554 = vmul.f32 %v534, %v550
    %v555 = vmul.f32 %v538, %v550
    %v556 = vmul.f32 %v542, %v550
    %v557 = vmul.f32 %v546, %v550
    %v558 = vadd.f32 %v487, %v552
    %v559 = vadd.f32 %v488, %v553
    %v560 = vadd.f32 %v489, %v554
    %v561 = vadd.f32 %v490, %v555
    %v562 = vadd.f32 %v491, %v556
    %v563 = vadd.f32 %v492, %v557
    %v564 = vlaneseq
    %v565 = vshrl.u32 %v564, 7
    %v566 = vsub.s32 2, %v565
    %v567 = vrot.slane %v404, %v566
    %v568 = vlaneseq
    %v569 = vshrl.u32 %v568, 7
    %v570 = vsub.s32 6, %v569
    %v571 = vrot.slane %v404, %v570
    %v572 = vlaneseq
    %v573 = vshrl.u32 %v572, 7
    %v574 = vsub.s32 2, %v573
    %v575 = vrot.slane %v405, %v574
    %v576 = vlaneseq
    %v577 = vshrl.u32 %v576, 7
    %v578 = vsub.s32 2, %v577
    %v579 = vrot.slane %v406, %v578
    %v580 = vlaneseq
    %v581 = vshrl.u32 %v580, 7
    %v582 = vsub.s32 6, %v581
    %v583 = vrot.slane %v406, %v582
    %v584 = vlaneseq
    %v585 = vshrl.u32 %v584, 7
    %v586 = vsub.s32 2, %v585
    %v587 = vrot.slane %v407, %v586
    %v594 = vlaneseq
    %v595 = vshrl.u32 %v594, 7
    %v596 = vsub.s32 2, %v595
    %v597 = vrot.slane %v567, %v596
    %v598 = vlaneseq
    %v599 = vshrl.u32 %v598, 7
    %v600 = vsub.s32 2, %v599
    %v601 = vrot.slane %v571, %v600
    %v602 = vlaneseq
    %v603 = vshrl.u32 %v602, 7
    %v604 = vsub.s32 2, %v603
    %v605 = vrot.slane %v575, %v604
    %v606 = vlaneseq
    %v607 = vshrl.u32 %v606, 7
    %v608 = vsub.s32 2, %v607
    %v609 = vrot.slane %v579, %v608
    %v610 = vlaneseq
    %v611 = vshrl.u32 %v610, 7
    %v612 = vsub.s32 2, %v611
    %v613 = vrot.slane %v583, %v612
    %v614 = vlaneseq
    %v615 = vshrl.u32 %v614, 7
    %v616 = vsub.s32 2, %v615
    %v617 = vrot.slane %v587, %v616
    %619 = vset.pattern.permute.xlu0 0
    %620 = vperm.xlu0 %619, %v410
    %v621 = vpop.permute.xlu0 %620
    %v623 = vmul.f32 %v597, %v621
    %v624 = vmul.f32 %v601, %v621
    %v625 = vmul.f32 %v605, %v621
    %v626 = vmul.f32 %v609, %v621
    %v627 = vmul.f32 %v613, %v621
    %v628 = vmul.f32 %v617, %v621
    %v629 = vadd.f32 %v558, %v623
    %v630 = vadd.f32 %v559, %v624
    %v631 = vadd.f32 %v560, %v625
    %v632 = vadd.f32 %v561, %v626
    %v633 = vadd.f32 %v562, %v627
    %v634 = vadd.f32 %v563, %v628
    %v635 = vlaneseq
    %v636 = vshrl.u32 %v635, 7
    %v637 = vsub.s32 3, %v636
    %v638 = vrot.slane %v404, %v637
    %v639 = vlaneseq
    %v640 = vshrl.u32 %v639, 7
    %v641 = vsub.s32 7, %v640
    %v642 = vrot.slane %v404, %v641
    %v643 = vlaneseq
    %v644 = vshrl.u32 %v643, 7
    %v645 = vsub.s32 3, %v644
    %v646 = vrot.slane %v405, %v645
    %v647 = vlaneseq
    %v648 = vshrl.u32 %v647, 7
    %v649 = vsub.s32 3, %v648
    %v650 = vrot.slane %v406, %v649
    %v651 = vlaneseq
    %v652 = vshrl.u32 %v651, 7
    %v653 = vsub.s32 7, %v652
    %v654 = vrot.slane %v406, %v653
    %v655 = vlaneseq
    %v656 = vshrl.u32 %v655, 7
    %v657 = vsub.s32 3, %v656
    %v658 = vrot.slane %v407, %v657
    %v665 = vlaneseq
    %v666 = vshrl.u32 %v665, 7
    %v667 = vsub.s32 3, %v666
    %v668 = vrot.slane %v638, %v667
    %v669 = vlaneseq
    %v670 = vshrl.u32 %v669, 7
    %v671 = vsub.s32 3, %v670
    %v672 = vrot.slane %v642, %v671
    %v673 = vlaneseq
    %v674 = vshrl.u32 %v673, 7
    %v675 = vsub.s32 3, %v674
    %v676 = vrot.slane %v646, %v675
    %v677 = vlaneseq
    %v678 = vshrl.u32 %v677, 7
    %v679 = vsub.s32 3, %v678
    %v680 = vrot.slane %v650, %v679
    %v681 = vlaneseq
    %v682 = vshrl.u32 %v681, 7
    %v683 = vsub.s32 3, %v682
    %v684 = vrot.slane %v654, %v683
    %v685 = vlaneseq
    %v686 = vshrl.u32 %v685, 7
    %v687 = vsub.s32 3, %v686
    %v688 = vrot.slane %v658, %v687
    %690 = vset.pattern.permute.xlu0 0
    %691 = vperm.xlu0 %690, %v411
    %v692 = vpop.permute.xlu0 %691
    %v694 = vmul.f32 %v668, %v692
    %v695 = vmul.f32 %v672, %v692
    %v696 = vmul.f32 %v676, %v692
    %v697 = vmul.f32 %v680, %v692
    %v698 = vmul.f32 %v684, %v692
    %v699 = vmul.f32 %v688, %v692
    %v700 = vadd.f32 %v629, %v694
    %v701 = vadd.f32 %v630, %v695
    %v702 = vadd.f32 %v631, %v696
    %v703 = vadd.f32 %v632, %v697
    %v704 = vadd.f32 %v633, %v698
    %v705 = vadd.f32 %v634, %v699
    %706 = vst [vmem:[#allocation2] sm:$0xff] %v700
    %707 = vst [vmem:[#allocation2 + $0x8] sm:$0xff] %v701
    %vm708 = vcmask 261120
    %709 = vst.msk [vmem:[#allocation2 + $0x10] sm:$0xff] %vm708, %v702
    %710 = vst [vmem:[#allocation2 + $0x18] sm:$0xff] %v703
    %711 = vst [vmem:[#allocation2 + $0x20] sm:$0xff] %v704
    %712 = vst.msk [vmem:[#allocation2 + $0x28] sm:$0xff] %vm708, %v705
    // Predicated region
    $region18: #{tpu_custom_call.1} parent=1 // pred_check
      _
    $region19: #{tpu_custom_call.1} parent=1 // pred_check_branch
      %714 = sbr.rel (0) target = $region21
    $region20: #{tpu_custom_call.1} parent=1 // pred_region
      %s716 = ssub.s32 768, 768
      %717 = vsyncadd [#allocation3], %s716
      %s718 = sshll.u32 [#allocation2], 4
      %s719 = int_to_ptr.vmem [resolvable:$true] %s718
      %724 = dma.vmem_to_hbm [thread:$0]  %s719, 768, %s4, [#allocation3], 384, 384, 24
    $region21: #{tpu_custom_call.1} parent=1 // pred_fallthru
      _
    // Predicated region
    $region22: #{tpu_custom_call.1} parent=1 // pred_check
      _
    $region23: #{tpu_custom_call.1} parent=1 // pred_check_branch
      %726 = sbr.rel (0) target = $region25
    $region24: #{tpu_custom_call.1} parent=1 // pred_region
      %727 = dma.done [#allocation3], 768
    $region25: #{tpu_custom_call.1} parent=1 // pred_fallthru
      _
    %728 = vsyncpa [#allocation3], 1

</llo_original>
